<compile_context>
chip_gen: v5e
topology: v5e:2x2
jax: 0.10.0
libtpu: 0.0.40
codegen_flags: <defaults>
</compile_context>

<pallas_src>
import functools

import jax
import jax.numpy as jnp
from jax import lax
from jax.experimental import pallas as pl
from jax.experimental.pallas import tpu as pltpu

_NEG = -1.0e30          # finite "minus infinity" used for padding
_SAFE_SPREAD = 72.0     # max in-tile (tile_max - col_max) for the single-exp path
_CLAMP = 81.0           # clamp for the rescale exponent (exact when spread <= 72)
_SINGLE_TILE_MAX = 1024


def _clip_loss_kernel(x_ref, xd_ref, colm_ref, cols_ref, rowlse_ref, diag_ref,
                      m_row_ref, s_row_ref, *, n, tr, tc, col_padded, use_mxu):
    j = pl.program_id(1)
    f32 = jnp.float32

    x = x_ref[...].astype(f32)                                  # (tr, tc)

    # ---- diagonal logits: once per row tile, from the (tr, tr) diagonal block ----
    @pl.when(j == 0)
    def _diag():
        xd = xd_ref[...].astype(f32)                            # (tr, tr)
        rr = lax.broadcasted_iota(jnp.int32, (tr, tr), 0)
        cc = lax.broadcasted_iota(jnp.int32, (tr, tr), 1)
        # padded diagonal entries are _NEG; the epilogue slices them away ([:n])
        diag_ref[...] = jnp.sum(jnp.where(rr == cc, xd, 0.0), axis=1,
                                keepdims=True)                  # (tr, 1)

    # ---- row-direction online LSE (carried across column tiles) -----------------
    row_max_t = jnp.max(x, axis=1, keepdims=True)               # (tr, 1)
    p = jnp.exp(x - row_max_t)                                  # (tr, tc), <= 1
    if use_mxu:
        ones_c = jnp.ones((tc, 1), f32)
        row_sum_t = jnp.dot(p, ones_c, preferred_element_type=f32)   # (tr, 1) MXU
    else:
        row_sum_t = jnp.sum(p, axis=1, keepdims=True)

    @pl.when(j == 0)
    def _init_row_carry():
        m_row_ref[...] = jnp.full_like(m_row_ref, _NEG)
        s_row_ref[...] = jnp.zeros_like(s_row_ref)

    m_old = m_row_ref[...]
    m_new = jnp.maximum(m_old, row_max_t)
    s_row_ref[...] = (s_row_ref[...] * jnp.exp(m_old - m_new)
                      + row_sum_t * jnp.exp(row_max_t - m_new))
    m_row_ref[...] = m_new

    @pl.when(j == pl.num_programs(1) - 1)
    def _row_finalize():
        # padded rows give _NEG + log(width); the epilogue slices them away ([:n])
        rowlse_ref[...] = m_row_ref[...] + jnp.log(s_row_ref[...])   # (tr, 1)

    # ---- column-direction per-tile partials (merged in the JAX epilogue) --------
    col_max_t = jnp.max(x, axis=0, keepdims=True)               # (1, tc)
    c = jnp.max(row_max_t)                                      # scalar tile max
    colm_ref[...] = col_max_t.reshape(1, 1, tc)

    if col_padded:
        gcol = j * tc + lax.broadcasted_iota(jnp.int32, (1, tc), 1)
        col_max_chk = jnp.where(gcol < n, col_max_t, c)         # ignore padded cols
    else:
        col_max_chk = col_max_t
    danger = jnp.any(col_max_chk < c - _SAFE_SPREAD)

    @pl.when(jnp.logical_not(danger))
    def _col_fast():
        # Reuse p:  sum_i exp(x_ij - c) == sum_i p_ij * exp(row_max_i - c)   (MXU)
        row_factor = jnp.exp(row_max_t - c)                     # (tr, 1), <= 1
        if use_mxu:
            s_raw = lax.dot_general(row_factor, p, (((0,), (0,)), ((), ())),
                                    preferred_element_type=f32)      # (1, tc)
        else:
            s_raw = jnp.sum(p * row_factor, axis=0, keepdims=True)
        # rescale to the per-column reference; clamp keeps padded (_NEG) cols finite
        scale = jnp.exp(jnp.minimum(c - col_max_t, _CLAMP))
        cols_ref[...] = (s_raw * scale).reshape(1, 1, tc)

    @pl.when(danger)
    def _col_exact():
        # Wide in-tile dynamic range: exact per-column-referenced second exp pass.
        q = jnp.exp(x - col_max_t)                              # (tr, tc), <= 1
        if use_mxu:
            ones_r = jnp.ones((tr, 1), f32)
            s_exact = lax.dot_general(ones_r, q, (((0,), (0,)), ((), ())),
                                      preferred_element_type=f32)    # (1, tc)
        else:
            s_exact = jnp.sum(q, axis=0, keepdims=True)
        cols_ref[...] = s_exact.reshape(1, 1, tc)


def _round_up(x, m):
    return ((x + m - 1) // m) * m


def clip_loss_pallas(logits_per_text: jax.Array, *, tile_rows=None, tile_cols=None,
                     cast_to_bf16: bool = False) -> jax.Array:
    """CLIP loss of a square [N, N] logits_per_text matrix -> scalar f32."""
    x = logits_per_text
    n, m_ = x.shape
    assert n == m_, "logits_per_text must be square [N, N]"
    if x.dtype == jnp.float16:
        x = x.astype(jnp.float32)            # keep the -1e30 padding representable
    if cast_to_bf16 and x.dtype == jnp.float32:
        # Optional: ~2x on HBM-bound v5e/v6e (compute stays f32 in-kernel).
        x = x.astype(jnp.bfloat16)
    itemsize = jnp.dtype(x.dtype).itemsize

    # ---- generation-aware VMEM budget (v7x: 64 MiB, v5e/v6e: 128 MiB) -----------
    try:
        vmem_cap = int(pltpu.get_tpu_info().vmem_capacity_bytes)
    except Exception:  # interpret mode / older API: assume the smallest (v7x)
        vmem_cap = 64 * 1024 * 1024
    budget = (vmem_cap * 7) // 10

    def _working_bytes(tr_, tc_):
        # double-buffered x tile + double-buffered diag tile + f32 temps (x, p, q)
        return (2 * tr_ * tc_ * itemsize + 2 * tr_ * tr_ * itemsize
                + 3 * tr_ * tc_ * 4 + 8 * (tr_ + tc_) * 4 + (1 << 20))

    # ---- tile selection ----------------------------------------------------------
    if tile_rows is None and tile_cols is None and n <= _SINGLE_TILE_MAX:
        tr = tc = n
        r_pad = c_pad = n
    else:
        if tile_rows is not None or tile_cols is not None:
            tr = int(tile_rows) if tile_rows is not None else 256
            tc_max = int(tile_cols) if tile_cols is not None else max(tr, 512)
        else:
            cands = [(512, 2048), (512, 1024), (256, 1024), (256, 512),
                     (128, 512), (128, 256), (128, 128)]
            tr, tc_max = cands[-1]
            for cand in cands:
                if _working_bytes(*cand) <= budget:
                    tr, tc_max = cand
                    break
        tr = max(128, (tr // 128) * 128)
        tc_max = max(tr, (tc_max // tr) * tr)
        # balance column tiles so padding waste stays small; tc is a multiple of tr
        nct = -(-n // tc_max)
        tc = _round_up(-(-n // nct), tr)
        c_pad = nct * tc
        r_pad = _round_up(n, tr)

    nrt = r_pad // tr
    nct = c_pad // tc
    col_padded = (c_pad != n)
    use_mxu = (tr % 8 == 0) and (tc % 128 == 0)

    # pad only when needed (avoids an extra HBM round trip for aligned N)
    if (r_pad != n) or (c_pad != n):
        xp = jnp.pad(x, ((0, r_pad - n), (0, c_pad - n)), constant_values=_NEG)
    else:
        xp = x

    working = _working_bytes(tr, tc)
    vmem_limit = int(min(max(working + (16 << 20), 32 << 20),
                         vmem_cap - (2 << 20)))

    kernel = functools.partial(_clip_loss_kernel, n=n, tr=tr, tc=tc,
                               col_padded=col_padded, use_mxu=use_mxu)

    col_m, col_s, row_lse, diag = pl.pallas_call(
        kernel,
        out_shape=(
            jax.ShapeDtypeStruct((nrt, 1, c_pad), jnp.float32),  # per-tile col max
            jax.ShapeDtypeStruct((nrt, 1, c_pad), jnp.float32),  # per-tile col sum
            jax.ShapeDtypeStruct((r_pad, 1), jnp.float32),       # row LSE
            jax.ShapeDtypeStruct((r_pad, 1), jnp.float32),       # diagonal logits
        ),
        grid_spec=pltpu.PrefetchScalarGridSpec(
            num_scalar_prefetch=0,
            grid=(nrt, nct),
            in_specs=[
                pl.BlockSpec((tr, tc), lambda i, j: (i, j)),
                pl.BlockSpec((tr, tr), lambda i, j: (i, i)),     # diagonal block
            ],
            out_specs=[
                pl.BlockSpec((1, 1, tc), lambda i, j: (i, 0, j)),
                pl.BlockSpec((1, 1, tc), lambda i, j: (i, 0, j)),
                pl.BlockSpec((tr, 1), lambda i, j: (i, 0)),
                pl.BlockSpec((tr, 1), lambda i, j: (i, 0)),
            ],
            scratch_shapes=[
                pltpu.VMEM((tr, 1), jnp.float32),   # running row max
                pltpu.VMEM((tr, 1), jnp.float32),   # running (rescaled) row sum
            ],
        ),
        compiler_params=pltpu.CompilerParams(
            # no cross-row-tile carry -> row-tile axis is parallel (v7x 2-TC split);
            # column axis carries the (tr,1) row scratch -> arbitrary.
            dimension_semantics=("parallel", "arbitrary"),
            vmem_limit_bytes=vmem_limit,
        ),
    )(xp, xp)

    # ---- tiny JAX epilogue: merge per-row-tile column partials, O(N^2/tr) -------
    cm = col_m[:, 0, :n]                               # (nrt, n)
    cs = col_s[:, 0, :n]
    m_col = jnp.max(cm, axis=0)                        # (n,)
    s_col = jnp.sum(cs * jnp.exp(cm - m_col[None, :]), axis=0)
    col_total = jnp.sum(m_col + jnp.log(s_col))
    row_total = jnp.sum(row_lse[:n, 0])
    diag_total = jnp.sum(diag[:n, 0])
    return (row_total + col_total - 2.0 * diag_total) / (2.0 * n)


def clip_loss_ref(logits_per_text: jax.Array) -> jax.Array:
    """Pure-JAX reference (matches PyTorch clip_loss semantics)."""
    x = logits_per_text.astype(jnp.float32)
    n = x.shape[0]
    labels = jnp.arange(n)
    caption_loss = -jnp.mean(jax.nn.log_softmax(x, axis=-1)[labels, labels])
    image_loss = -jnp.mean(jax.nn.log_softmax(x.T, axis=-1)[labels, labels])
    return (caption_loss + image_loss) / 2.0


if __name__ == "__main__":
    key = jax.random.PRNGKey(0)
    k1, k2, k3, k4 = jax.random.split(key, 4)

    # 1) tiny single-tile case (typical small contrastive batch)
    a = jax.random.normal(k1, (8, 8), dtype=jnp.float32) * 3.0
    # 2) multi-tile path: 2-D grid, column padding, diagonal-block input, MXU dots
    b = jax.random.normal(k2, (384, 384), dtype=jnp.float32) * 3.0
    # 3) bf16 input, single tile, N not a multiple of 128
    c = (jax.random.normal(k3, (200, 200), dtype=jnp.float32) * 3.0).astype(jnp.bfloat16)
    # 4) wide dynamic range (CLIP-scale logits): exercises the exact per-column
    #    fallback path plus row+column padding
    d = jax.random.normal(k4, (250, 250), dtype=jnp.float32) * 40.0

    cases = [
        (a, dict(), 1e-4),
        (b, dict(tile_rows=128, tile_cols=256), 1e-4),
        (c, dict(), 1e-3),
        (d, dict(tile_rows=128, tile_cols=128), 1e-3),
    ]
    for x_in, kw, atol in cases:
        got = jax.block_until_ready(clip_loss_pallas(x_in, **kw))
        ref = jax.block_until_ready(clip_loss_ref(x_in))
        assert jnp.allclose(got, ref, atol=atol, rtol=1e-3), (x_in.shape, got, ref)

    print("KERNEL_OK")
</pallas_src>

<mosaic_0001>
module attributes {stable_mosaic.version = 11 : i64} {
  func.func @_clip_loss_kernel(%arg0: i32, %arg1: i32, %arg2: memref<8x8xf32, #tpu.memory_space<vmem>>, %arg3: memref<8x8xf32, #tpu.memory_space<vmem>>, %arg4: memref<1x1x8xf32, #tpu.memory_space<vmem>>, %arg5: memref<1x1x8xf32, #tpu.memory_space<vmem>>, %arg6: memref<8x1xf32, #tpu.memory_space<vmem>>, %arg7: memref<8x1xf32, #tpu.memory_space<vmem>>, %arg8: memref<8x1xf32, #tpu.memory_space<vmem>>, %arg9: memref<8x1xf32, #tpu.memory_space<vmem>>) attributes {dimension_semantics = [#tpu.dimension_semantics<parallel>, #tpu.dimension_semantics<arbitrary>], iteration_bounds = array<i64: 1, 1>, scalar_prefetch = 0 : i64, scratch_operands = 2 : i64, tpu.core_type = #tpu.core_type<tc>, window_params = [{transform_indices = @transform_0, window_bounds = array<i64: 8, 8>}, {transform_indices = @transform_1, window_bounds = array<i64: 8, 8>}, {transform_indices = @transform_2, window_bounds = array<i64: 1, 1, 8>}, {transform_indices = @transform_3, window_bounds = array<i64: 1, 1, 8>}, {transform_indices = @transform_4, window_bounds = array<i64: 8, 1>}, {transform_indices = @transform_5, window_bounds = array<i64: 8, 1>}]} {
    %c0 = arith.constant 0 : index
    %c0_0 = arith.constant 0 : index
    %0 = vector.load %arg2[%c0, %c0_0] : memref<8x8xf32, #tpu.memory_space<vmem>>, vector<8x8xf32>
    %c0_i32 = arith.constant 0 : i32
    %1 = arith.cmpi eq, %arg1, %c0_i32 : i32
    %2 = arith.extui %1 : i1 to i32
    %c0_i32_1 = arith.constant 0 : i32
    %3 = arith.cmpi ne, %2, %c0_i32_1 : i32
    scf.if %3 {
      %c0_27 = arith.constant 0 : index
      %c0_28 = arith.constant 0 : index
      %53 = vector.load %arg3[%c0_27, %c0_28] : memref<8x8xf32, #tpu.memory_space<vmem>>, vector<8x8xf32>
      %54 = tpu.iota {dimensions = array<i32: 0>} : vector<8x8xi32>
      %55 = tpu.iota {dimensions = array<i32: 1>} : vector<8x8xi32>
      %56 = arith.cmpi eq, %54, %55 : vector<8x8xi32>
      %cst_29 = arith.constant 0.000000e+00 : f32
      %57 = vector.broadcast %cst_29 : f32 to vector<8x8xf32>
      %58 = arith.select %56, %53, %57 : vector<8x8xi1>, vector<8x8xf32>
      %cst_30 = arith.constant dense<0.000000e+00> : vector<8xf32>
      %59 = vector.multi_reduction <add>, %58, %cst_30 [1] : vector<8x8xf32> to vector<8xf32>
      %60 = vector.shape_cast %59 : vector<8xf32> to vector<8x1xf32>
      %c0_31 = arith.constant 0 : index
      %c0_32 = arith.constant 0 : index
      %61 = vector.load %arg7[%c0_31, %c0_32] : memref<8x1xf32, #tpu.memory_space<vmem>>, vector<8x1xf32>
      tpu.vector_store %arg7[%c0_31, %c0_32], %60 {strides = array<i32>} : memref<8x1xf32, #tpu.memory_space<vmem>>, vector<8x1xf32>,
    } else {
    }
    %cst = arith.constant dense<0xFF800000> : vector<8xf32>
    %4 = vector.multi_reduction <maximumf>, %0, %cst [1] : vector<8x8xf32> to vector<8xf32>
    %5 = vector.shape_cast %4 : vector<8xf32> to vector<8x1xf32>
    %6 = vector.broadcast %5 : vector<8x1xf32> to vector<8x8xf32>
    %7 = arith.subf %0, %6 : vector<8x8xf32>
    %8 = math.exp %7 : vector<8x8xf32>
    %cst_2 = arith.constant dense<0.000000e+00> : vector<8xf32>
    %9 = vector.multi_reduction <add>, %8, %cst_2 [1] : vector<8x8xf32> to vector<8xf32>
    %10 = vector.shape_cast %9 : vector<8xf32> to vector<8x1xf32>
    %c0_i32_3 = arith.constant 0 : i32
    %11 = arith.cmpi eq, %arg1, %c0_i32_3 : i32
    %12 = arith.extui %11 : i1 to i32
    %c0_i32_4 = arith.constant 0 : i32
    %13 = arith.cmpi ne, %12, %c0_i32_4 : i32
    scf.if %13 {
      %cst_27 = arith.constant -1.000000e+30 : f32
      %53 = vector.broadcast %cst_27 : f32 to vector<8x1xf32>
      %c0_28 = arith.constant 0 : index
      %c0_29 = arith.constant 0 : index
      %54 = vector.load %arg8[%c0_28, %c0_29] : memref<8x1xf32, #tpu.memory_space<vmem>>, vector<8x1xf32>
      tpu.vector_store %arg8[%c0_28, %c0_29], %53 {strides = array<i32>} : memref<8x1xf32, #tpu.memory_space<vmem>>, vector<8x1xf32>,
      %cst_30 = arith.constant 0.000000e+00 : f32
      %55 = vector.broadcast %cst_30 : f32 to vector<8x1xf32>
      %c0_31 = arith.constant 0 : index
      %c0_32 = arith.constant 0 : index
      %56 = vector.load %arg9[%c0_31, %c0_32] : memref<8x1xf32, #tpu.memory_space<vmem>>, vector<8x1xf32>
      tpu.vector_store %arg9[%c0_31, %c0_32], %55 {strides = array<i32>} : memref<8x1xf32, #tpu.memory_space<vmem>>, vector<8x1xf32>,
    } else {
    }
    %c0_5 = arith.constant 0 : index
    %c0_6 = arith.constant 0 : index
    %14 = vector.load %arg8[%c0_5, %c0_6] : memref<8x1xf32, #tpu.memory_space<vmem>>, vector<8x1xf32>
    %15 = arith.maximumf %14, %5 : vector<8x1xf32>
    %c0_7 = arith.constant 0 : index
    %c0_8 = arith.constant 0 : index
    %16 = vector.load %arg9[%c0_7, %c0_8] : memref<8x1xf32, #tpu.memory_space<vmem>>, vector<8x1xf32>
    %17 = arith.subf %14, %15 : vector<8x1xf32>
    %18 = math.exp %17 : vector<8x1xf32>
    %19 = arith.mulf %16, %18 : vector<8x1xf32>
    %20 = arith.subf %5, %15 : vector<8x1xf32>
    %21 = math.exp %20 : vector<8x1xf32>
    %22 = arith.mulf %10, %21 : vector<8x1xf32>
    %23 = arith.addf %19, %22 : vector<8x1xf32>
    %c0_9 = arith.constant 0 : index
    %c0_10 = arith.constant 0 : index
    %24 = vector.load %arg9[%c0_9, %c0_10] : memref<8x1xf32, #tpu.memory_space<vmem>>, vector<8x1xf32>
    tpu.vector_store %arg9[%c0_9, %c0_10], %23 {strides = array<i32>} : memref<8x1xf32, #tpu.memory_space<vmem>>, vector<8x1xf32>,
    %c0_11 = arith.constant 0 : index
    %c0_12 = arith.constant 0 : index
    %25 = vector.load %arg8[%c0_11, %c0_12] : memref<8x1xf32, #tpu.memory_space<vmem>>, vector<8x1xf32>
    tpu.vector_store %arg8[%c0_11, %c0_12], %15 {strides = array<i32>} : memref<8x1xf32, #tpu.memory_space<vmem>>, vector<8x1xf32>,
    %c0_i32_13 = arith.constant 0 : i32
    %26 = arith.cmpi eq, %arg1, %c0_i32_13 : i32
    %27 = arith.extui %26 : i1 to i32
    %c0_i32_14 = arith.constant 0 : i32
    %28 = arith.cmpi ne, %27, %c0_i32_14 : i32
    scf.if %28 {
      %c0_27 = arith.constant 0 : index
      %c0_28 = arith.constant 0 : index
      %53 = vector.load %arg8[%c0_27, %c0_28] : memref<8x1xf32, #tpu.memory_space<vmem>>, vector<8x1xf32>
      %c0_29 = arith.constant 0 : index
      %c0_30 = arith.constant 0 : index
      %54 = vector.load %arg9[%c0_29, %c0_30] : memref<8x1xf32, #tpu.memory_space<vmem>>, vector<8x1xf32>
      %55 = math.log %54 : vector<8x1xf32>
      %56 = arith.addf %53, %55 : vector<8x1xf32>
      %c0_31 = arith.constant 0 : index
      %c0_32 = arith.constant 0 : index
      %57 = vector.load %arg6[%c0_31, %c0_32] : memref<8x1xf32, #tpu.memory_space<vmem>>, vector<8x1xf32>
      tpu.vector_store %arg6[%c0_31, %c0_32], %56 {strides = array<i32>} : memref<8x1xf32, #tpu.memory_space<vmem>>, vector<8x1xf32>,
    } else {
    }
    %cst_15 = arith.constant dense<0xFF800000> : vector<8xf32>
    %29 = vector.multi_reduction <maximumf>, %0, %cst_15 [0] : vector<8x8xf32> to vector<8xf32>
    %30 = vector.shape_cast %29 : vector<8xf32> to vector<1x8xf32>
    %31 = vector.shape_cast %5 : vector<8x1xf32> to vector<1x8x1xf32>
    %cst_16 = arith.constant dense<0xFF800000> : vector<1xf32>
    %32 = vector.multi_reduction <maximumf>, %31, %cst_16 [1, 2] : vector<1x8x1xf32> to vector<1xf32>
    %33 = vector.shape_cast %32 : vector<1xf32> to vector<1x1x1xf32>
    %34 = vector.extract %33[0, 0, 0] : f32 from vector<1x1x1xf32>
    %35 = vector.shape_cast %30 : vector<1x8xf32> to vector<1x1x8xf32>
    %c0_17 = arith.constant 0 : index
    %c0_18 = arith.constant 0 : index
    %c0_19 = arith.constant 0 : index
    %36 = vector.load %arg4[%c0_17, %c0_18, %c0_19] : memref<1x1x8xf32, #tpu.memory_space<vmem>>, vector<1x1x8xf32>
    tpu.vector_store %arg4[%c0_17, %c0_18, %c0_19], %35 {strides = array<i32>} : memref<1x1x8xf32, #tpu.memory_space<vmem>>, vector<1x1x8xf32>,
    %cst_20 = arith.constant 7.200000e+01 : f32
    %37 = arith.subf %34, %cst_20 : f32
    %38 = vector.broadcast %37 : f32 to vector<1x8xf32>
    %39 = arith.cmpf olt, %30, %38 : vector<1x8xf32>
    %cst_21 = arith.constant 1.000000e+00 : f32
    %cst_22 = arith.constant 0.000000e+00 : f32
    %40 = vector.broadcast %cst_21 : f32 to vector<1x8xf32>
    %41 = vector.broadcast %cst_22 : f32 to vector<1x8xf32>
    %42 = arith.select %39, %40, %41 : vector<1x8xi1>, vector<1x8xf32>
    %43 = vector.shape_cast %42 : vector<1x8xf32> to vector<1x1x8xf32>
    %cst_23 = arith.constant dense<0xFF800000> : vector<1xf32>
    %44 = vector.multi_reduction <maximumf>, %43, %cst_23 [1, 2] : vector<1x1x8xf32> to vector<1xf32>
    %45 = vector.shape_cast %44 : vector<1xf32> to vector<1x1x1xf32>
    %46 = vector.extract %45[0, 0, 0] : f32 from vector<1x1x1xf32>
    %cst_24 = arith.constant 0.000000e+00 : f32
    %47 = arith.cmpf ogt, %46, %cst_24 : f32
    %true = arith.constant true
    %48 = arith.xori %47, %true : i1
    %49 = arith.extui %48 : i1 to i32
    %c0_i32_25 = arith.constant 0 : i32
    %50 = arith.cmpi ne, %49, %c0_i32_25 : i32
    scf.if %50 {
      %53 = vector.broadcast %34 : f32 to vector<8x1xf32>
      %54 = arith.subf %5, %53 : vector<8x1xf32>
      %55 = math.exp %54 : vector<8x1xf32>
      %56 = vector.broadcast %55 : vector<8x1xf32> to vector<8x8xf32>
      %57 = arith.mulf %8, %56 : vector<8x8xf32>
      %cst_27 = arith.constant dense<0.000000e+00> : vector<8xf32>
      %58 = vector.multi_reduction <add>, %57, %cst_27 [0] : vector<8x8xf32> to vector<8xf32>
      %59 = vector.shape_cast %58 : vector<8xf32> to vector<1x8xf32>
      %60 = vector.broadcast %34 : f32 to vector<1x8xf32>
      %61 = arith.subf %60, %30 : vector<1x8xf32>
      %cst_28 = arith.constant 8.100000e+01 : f32
      %62 = vector.broadcast %cst_28 : f32 to vector<1x8xf32>
      %63 = arith.minimumf %61, %62 : vector<1x8xf32>
      %64 = math.exp %63 : vector<1x8xf32>
      %65 = arith.mulf %59, %64 : vector<1x8xf32>
      %66 = vector.shape_cast %65 : vector<1x8xf32> to vector<1x1x8xf32>
      %c0_29 = arith.constant 0 : index
      %c0_30 = arith.constant 0 : index
      %c0_31 = arith.constant 0 : index
      %67 = vector.load %arg5[%c0_29, %c0_30, %c0_31] : memref<1x1x8xf32, #tpu.memory_space<vmem>>, vector<1x1x8xf32>
      tpu.vector_store %arg5[%c0_29, %c0_30, %c0_31], %66 {strides = array<i32>} : memref<1x1x8xf32, #tpu.memory_space<vmem>>, vector<1x1x8xf32>,
    } else {
    }
    %51 = arith.extui %47 : i1 to i32
    %c0_i32_26 = arith.constant 0 : i32
    %52 = arith.cmpi ne, %51, %c0_i32_26 : i32
    scf.if %52 {
      %53 = vector.broadcast %30 : vector<1x8xf32> to vector<8x8xf32>
      %54 = arith.subf %0, %53 : vector<8x8xf32>
      %55 = math.exp %54 : vector<8x8xf32>
      %cst_27 = arith.constant dense<0.000000e+00> : vector<8xf32>
      %56 = vector.multi_reduction <add>, %55, %cst_27 [0] : vector<8x8xf32> to vector<8xf32>
      %57 = vector.shape_cast %56 : vector<8xf32> to vector<1x8xf32>
      %58 = vector.shape_cast %57 : vector<1x8xf32> to vector<1x1x8xf32>
      %c0_28 = arith.constant 0 : index
      %c0_29 = arith.constant 0 : index
      %c0_30 = arith.constant 0 : index
      %59 = vector.load %arg5[%c0_28, %c0_29, %c0_30] : memref<1x1x8xf32, #tpu.memory_space<vmem>>, vector<1x1x8xf32>
      tpu.vector_store %arg5[%c0_28, %c0_29, %c0_30], %58 {strides = array<i32>} : memref<1x1x8xf32, #tpu.memory_space<vmem>>, vector<1x1x8xf32>,
    } else {
    }
    return
  }
  func.func @transform_0(%arg0: i32, %arg1: i32) -> (i32, i32) {
    %c0_i32 = arith.constant 0 : i32
    return %arg0, %arg1 : i32, i32
  }
  func.func @transform_1(%arg0: i32, %arg1: i32) -> (i32, i32) {
    %c0_i32 = arith.constant 0 : i32
    return %arg0, %arg0 : i32, i32
  }
  func.func @transform_2(%arg0: i32, %arg1: i32) -> (i32, i32, i32) {
    %c0_i32 = arith.constant 0 : i32
    %c0_i32_0 = arith.constant 0 : i32
    return %arg0, %c0_i32, %arg1 : i32, i32, i32
  }
  func.func @transform_3(%arg0: i32, %arg1: i32) -> (i32, i32, i32) {
    %c0_i32 = arith.constant 0 : i32
    %c0_i32_0 = arith.constant 0 : i32
    return %arg0, %c0_i32, %arg1 : i32, i32, i32
  }
  func.func @transform_4(%arg0: i32, %arg1: i32) -> (i32, i32) {
    %c0_i32 = arith.constant 0 : i32
    %c0_i32_0 = arith.constant 0 : i32
    return %arg0, %c0_i32 : i32, i32
  }
  func.func @transform_5(%arg0: i32, %arg1: i32) -> (i32, i32) {
    %c0_i32 = arith.constant 0 : i32
    %c0_i32_0 = arith.constant 0 : i32
    return %arg0, %c0_i32 : i32, i32
  }
}

</mosaic_0001>

<llo_original>
// kernel: tpu_custom_call.1
$region0: #{tpu_custom_call.1}
  #allocation0 [shape = 'u32[]', space=smem, size = 0x4, offset = 0x4, fixed_abs, tag = 'smem constant byte address 0x4 - core index']
  #allocation1 [shape = 'u32[72,128]{1,0:T(1,128)}', space=vmem, size = 0x9000, scoped, tag = 'internal scratch']
  #allocation2 [shape = 'f32[8,1]{1,0:T(8,128)}', space=vmem, size = 0x1000, scoped, tag = 'scratch operand']
  #allocation3 [shape = 'f32[8,1]{1,0:T(8,128)}', space=vmem, size = 0x1000, scoped, tag = 'scratch operand']
  %s0 = inlined_call_operand.hbm [shape: f32[8,8], index: 0, kind: input, shape index: {}]
  %s1 = inlined_call_operand.hbm [shape: f32[8,8], index: 1, kind: input, shape index: {}]
  %s2 = inlined_call_operand.hbm [shape: f32[1,1,8], index: 2, kind: output, shape index: {0}]
  %s3 = inlined_call_operand.hbm [shape: f32[1,1,8], index: 3, kind: output, shape index: {1}]
  %s4 = inlined_call_operand.vmem [shape: f32[8,1], index: 4, kind: output, shape index: {2}]
  %s5 = inlined_call_operand.vmem [shape: f32[8,1], index: 5, kind: output, shape index: {3}]
  %6 = xla_tuple %s2, %s3, %s4, %s5
  %s7 = sld [smem:[#allocation0]]
  $region70: #{tpu_custom_call.1} parent=0
    _
  %s9 = ssub.s32 1, %s7
  %s10 = scalar_select 0, %s9, %s7
  $region1: #{tpu_custom_call.1} parent=0
    #allocation4 [shape = 'u8[4096]{0}', space=vmem, size = 0x1000, scoped, tag = 'input window, operand 0, single buffered']
    #allocation5 [shape = 's32[1]{0}', space=sflag, size = 0x4, scoped, tag = 'scoped memory for tpu_custom_call.1']
    #allocation6 [shape = 's32[1]{0}', space=sflag, size = 0x4, scoped, tag = 'scoped memory for tpu_custom_call.1']
    #allocation7 [shape = 'u8[4096]{0}', space=vmem, size = 0x1000, scoped, tag = 'input window, operand 1, single buffered']
    #allocation8 [shape = 's32[1]{0}', space=sflag, size = 0x4, scoped, tag = 'scoped memory for tpu_custom_call.1']
    #allocation9 [shape = 'u8[512]{0}', space=vmem, size = 0x400, scoped, tag = 'output window, operand 0, single buffered']
    #allocation10 [shape = 'u8[512]{0}', space=vmem, size = 0x400, scoped, tag = 'output window, operand 1, single buffered']
    #allocation11 [shape = 's32[1]{0}', space=sflag, size = 0x4, scoped, tag = 'scoped memory for tpu_custom_call.1']
    %11 = vsyncpa [#allocation5], 0
    %12 = vsyncpa [#allocation8], 0
    %13 = vsyncpa [#allocation6], 0
    %14 = vsyncpa [#allocation11], 0
    // Predicated region
    $region2: #{tpu_custom_call.1} parent=1 // pred_check
      _
    $region3: #{tpu_custom_call.1} parent=1 // pred_check_branch
      %16 = sbr.rel (0) target = $region5
    $region4: #{tpu_custom_call.1} parent=1 // pred_region
      %18 = vsyncadd [#allocation5], 0
      %s20 = sshll.u32 %s0, 4
      %s21 = int_to_ptr.hbm [resolvable:$true] %s20
      %s22 = sshll.u32 [#allocation4], 4
      %s23 = int_to_ptr.vmem [resolvable:$true] %s22
      %25 = dma.hbm_to_vmem [thread:$0]  %s21, 128, %s23, [#allocation5]
    $region5: #{tpu_custom_call.1} parent=1 // pred_fallthru
      _
    // Predicated region
    $region6: #{tpu_custom_call.1} parent=1 // pred_check
      _
    $region7: #{tpu_custom_call.1} parent=1 // pred_check_branch
      %27 = sbr.rel (0) target = $region9
    $region8: #{tpu_custom_call.1} parent=1 // pred_region
      %29 = vsyncadd [#allocation8], 0
      %s31 = sshll.u32 %s1, 4
      %s32 = int_to_ptr.hbm [resolvable:$true] %s31
      %s33 = sshll.u32 [#allocation7], 4
      %s34 = int_to_ptr.vmem [resolvable:$true] %s33
      %36 = dma.hbm_to_vmem [thread:$0]  %s32, 128, %s34, [#allocation8]
    $region9: #{tpu_custom_call.1} parent=1 // pred_fallthru
      _
    // Predicated region
    $region10: #{tpu_custom_call.1} parent=1 // pred_check
      _
    $region11: #{tpu_custom_call.1} parent=1 // pred_check_branch
      %38 = sbr.rel (0) target = $region13
    $region12: #{tpu_custom_call.1} parent=1 // pred_region
      %40 = dma.done [#allocation5], 128
    $region13: #{tpu_custom_call.1} parent=1 // pred_fallthru
      _
    // Predicated region
    $region14: #{tpu_custom_call.1} parent=1 // pred_check
      _
    $region15: #{tpu_custom_call.1} parent=1 // pred_check_branch
      %42 = sbr.rel (0) target = $region17
    $region16: #{tpu_custom_call.1} parent=1 // pred_region
      %44 = dma.done [#allocation8], 128
    $region17: #{tpu_custom_call.1} parent=1 // pred_fallthru
      _
    %v45 = vld [vmem:[#allocation4] sm:$0xff]
    %p46 = scmp.eq.s32.totalorder 0, 0
    // Predicated region
    $region18: #{tpu_custom_call.1} parent=1 // pred_check
      %p47 = pneg %p46
    $region19: #{tpu_custom_call.1} parent=1 // pred_check_branch
      %49 = sbr.rel (%p47) target = $region21
    $region20: #{tpu_custom_call.1} parent=1 // pred_region
      %v50 = vld [vmem:[#allocation7] sm:$0xff]
      %v51 = vlaneseq
      %v52 = vshrl.u32 %v51, 7
      %v53 = vlaneseq
      %v54 = vand.u32 %v53, 127
      %vm55 = vcmp.eq.s32.totalorder %v52, %v54
      %v56 = vsel %vm55, %v50, 0.0
      %vm57 = vcmask 64512
      %v58 = vsel %vm57, %v56, 0.0
      %59 = vadd.xlane.f32.xlu0 %v58
      %v60 = vpop.xlane.xlu0 %59
      %vm61 = vcmask 7168
      %62 = vst.msk [vmem:[%s5] sm:$0xff] %vm61, %v60
    $region21: #{tpu_custom_call.1} parent=1 // pred_fallthru
      _
    %vm63 = vcmask 64512
    %v64 = vsel %vm63, %v45, -inf
    %65 = vmax.xlane.f32.xlu0 %v64
    %v66 = vpop.xlane.xlu0 %65
    %v67 = vsub.f32 %v45, %v66
    %v68 = vmul.f32 %v67, 1.442695
    %v69 = vpow.pop %v68
    %v70 = vsel %vm63, %v69, 0.0
    %71 = vadd.xlane.f32.xlu0 %v70
    %v72 = vpop.xlane.xlu0 %71
    // Predicated region
    $region22: #{tpu_custom_call.1} parent=1 // pred_check
      %p73 = pneg %p46
    $region23: #{tpu_custom_call.1} parent=1 // pred_check_branch
      %75 = sbr.rel (%p73) target = $region25
    $region24: #{tpu_custom_call.1} parent=1 // pred_region
      %vm76 = vcmask 7168
      %77 = vst.msk [vmem:[#allocation2] sm:$0xff] %vm76, -1e+30
      %78 = vst.msk [vmem:[#allocation3] sm:$0xff] %vm76, 0.0
    $region25: #{tpu_custom_call.1} parent=1 // pred_fallthru
      _
    %v79 = vld [vmem:[#allocation2] sm:$0xff]
    %v80 = vmax.f32 %v79, %v66
    %v81 = vld [vmem:[#allocation3] sm:$0xff]
    %v82 = vsub.f32 %v79, %v80
    %v83 = vmul.f32 %v82, 1.442695
    %v84 = vpow.pop %v83
    %v85 = vmul.f32 %v81, %v84
    %v86 = vsub.f32 %v66, %v80
    %v87 = vmul.f32 %v86, 1.442695
    %v88 = vpow.pop %v87
    %v89 = vmul.f32 %v72, %v88
    %v90 = vadd.f32 %v85, %v89
    %vm91 = vcmask 7168
    %92 = vst.msk [vmem:[#allocation3] sm:$0xff] %vm91, %v90
    %93 = vst.msk [vmem:[#allocation2] sm:$0xff] %vm91, %v80
    // Predicated region
    $region26: #{tpu_custom_call.1} parent=1 // pred_check
      %p94 = pneg %p46
    $region27: #{tpu_custom_call.1} parent=1 // pred_check_branch
      %96 = sbr.rel (%p94) target = $region29
    $region28: #{tpu_custom_call.1} parent=1 // pred_region
      %v97 = vld [vmem:[#allocation2] sm:$0xff]
      %v98 = vld [vmem:[#allocation3] sm:$0xff]
      %v99 = vlog2.pop %v98
      %v100 = vmul.f32 %v99, 0.6931472
      %v101 = vadd.f32 %v97, %v100
      %102 = vst.msk [vmem:[%s4] sm:$0xff] %vm91, %v101
    $region29: #{tpu_custom_call.1} parent=1 // pred_fallthru
      _
    %v103 = vrot.slane %v64, 4
    %v104 = vmax.f32 %v64, %v103
    %v105 = vrot.slane %v104, 2
    %v106 = vmax.f32 %v104, %v105
    %v107 = vrot.slane %v106, 1
    %v108 = vmax.f32 %v106, %v107
    %v109 = vrot.slane %v66, 4
    %v110 = vmax.f32 %v66, %v109
    %v111 = vrot.slane %v110, 2
    %v112 = vmax.f32 %v110, %v111
    %v113 = vrot.slane %v112, 1
    %v114 = vmax.f32 %v112, %v113
    %s115 = vtos %v114
    %vm116 = vcmask 57344
    %117 = vst.msk [vmem:[#allocation9] sm:$0x1] %vm116, %v108
    %s118 = ssub.f32 %s115, 72.0
    %v119 = vstv %s118
    %vm120 = vcmp.lt.f32.partialorder %v108, %v119
    %v121 = vsel %vm120, 1.0, 0.0
    %v122 = vsel %vm63, %v121, -inf
    %123 = vmax.xlane.f32.xlu0 %v122
    %v124 = vpop.xlane.xlu0 %123
    %s125 = vtos %v124
    %p126 = scmp.gt.f32.partialorder %s125, 0.0
    // Predicated region
    $region30: #{tpu_custom_call.1} parent=1 // pred_check
      %p127 = pneg %p126
    $region31: #{tpu_custom_call.1} parent=1 // pred_check_branch
      %129 = sbr.rel (%p127) target = $region33
    $region32: #{tpu_custom_call.1} parent=1 // pred_region
      %v130 = vsub.f32 %v45, %v108
      %v131 = vmul.f32 %v130, 1.442695
      %v132 = vpow.pop %v131
      %v133 = vsel %vm63, %v132, 0.0
      %v134 = vrot.slane %v133, 4
      %v135 = vadd.f32 %v133, %v134
      %v136 = vrot.slane %v135, 2
      %v137 = vadd.f32 %v135, %v136
      %v138 = vrot.slane %v137, 1
      %v139 = vadd.f32 %v137, %v138
      %140 = vst.msk [vmem:[#allocation10] sm:$0x1] %vm116, %v139
    $region33: #{tpu_custom_call.1} parent=1 // pred_fallthru
      _
    %p141 = pneg %p126
    // Predicated region
    $region34: #{tpu_custom_call.1} parent=1 // pred_check
      _
    $region35: #{tpu_custom_call.1} parent=1 // pred_check_branch
      %143 = sbr.rel (%p126) target = $region37
    $region36: #{tpu_custom_call.1} parent=1 // pred_region
      %v144 = vstv %s115
      %v145 = vsub.f32 %v66, %v144
      %v146 = vmul.f32 %v145, 1.442695
      %v147 = vpow.pop %v146
      %v148 = vmul.f32 %v69, %v147
      %v149 = vsel %vm63, %v148, 0.0
      %v150 = vrot.slane %v149, 4
      %v151 = vadd.f32 %v149, %v150
      %v152 = vrot.slane %v151, 2
      %v153 = vadd.f32 %v151, %v152
      %v154 = vrot.slane %v153, 1
      %v155 = vadd.f32 %v153, %v154
      %v156 = vsub.f32 %v144, %v108
      %v157 = vmin.f32 %v156, 81.0
      %v158 = vmul.f32 %v157, 1.442695
      %v159 = vpow.pop %v158
      %v160 = vmul.f32 %v155, %v159
      %161 = vst.msk [vmem:[#allocation10] sm:$0x1] %vm116, %v160
    $region37: #{tpu_custom_call.1} parent=1 // pred_fallthru
      _
    // Predicated region
    $region38: #{tpu_custom_call.1} parent=1 // pred_check
      _
    $region39: #{tpu_custom_call.1} parent=1 // pred_check_branch
      %163 = sbr.rel (0) target = $region41
    $region40: #{tpu_custom_call.1} parent=1 // pred_region
      %165 = vsyncadd [#allocation6], 0
      %s167 = sshll.u32 [#allocation9], 4
      %s168 = int_to_ptr.vmem [resolvable:$true] %s167
      %s169 = sshll.u32 %s2, 4
      %s170 = int_to_ptr.hbm [resolvable:$true] %s169
      %172 = dma.vmem_to_hbm [thread:$0]  %s168, 16, %s170, [#allocation6]
    $region41: #{tpu_custom_call.1} parent=1 // pred_fallthru
      _
    // Predicated region
    $region42: #{tpu_custom_call.1} parent=1 // pred_check
      _
    $region43: #{tpu_custom_call.1} parent=1 // pred_check_branch
      %174 = sbr.rel (0) target = $region45
    $region44: #{tpu_custom_call.1} parent=1 // pred_region
      %176 = vsyncadd [#allocation11], 0
      %s178 = sshll.u32 [#allocation10], 4
      %s179 = int_to_ptr.vmem [resolvable:$true] %s178
      %s180 = sshll.u32 %s3, 4
      %s181 = int_to_ptr.hbm [resolvable:$true] %s180
      %183 = dma.vmem_to_hbm [thread:$0]  %s179, 16, %s181, [#allocation11]
    $region45: #{tpu_custom_call.1} parent=1 // pred_fallthru
      _
    // Predicated region
    $region46: #{tpu_custom_call.1} parent=1 // pred_check
      _
    $region47: #{tpu_custom_call.1} parent=1 // pred_check_branch
      %185 = sbr.rel (0) target = $region49
    $region48: #{tpu_custom_call.1} parent=1 // pred_region
      _
    $region49: #{tpu_custom_call.1} parent=1 // pred_fallthru
      _
    // Predicated region
    $region50: #{tpu_custom_call.1} parent=1 // pred_check
      _
    $region51: #{tpu_custom_call.1} parent=1 // pred_check_branch
      %187 = sbr.rel (0) target = $region53
    $region52: #{tpu_custom_call.1} parent=1 // pred_region
      _
    $region53: #{tpu_custom_call.1} parent=1 // pred_fallthru
      _
    // Predicated region
    $region54: #{tpu_custom_call.1} parent=1 // pred_check
      _
    $region55: #{tpu_custom_call.1} parent=1 // pred_check_branch
      %189 = sbr.rel (0) target = $region57
    $region56: #{tpu_custom_call.1} parent=1 // pred_region
      %191 = dma.done [#allocation6], 16
    $region57: #{tpu_custom_call.1} parent=1 // pred_fallthru
      _
    // Predicated region
    $region58: #{tpu_custom_call.1} parent=1 // pred_check
      _
    $region59: #{tpu_custom_call.1} parent=1 // pred_check_branch
      %193 = sbr.rel (0) target = $region61
    $region60: #{tpu_custom_call.1} parent=1 // pred_region
      %195 = dma.done [#allocation11], 16
    $region61: #{tpu_custom_call.1} parent=1 // pred_fallthru
      _
    // Predicated region
    $region62: #{tpu_custom_call.1} parent=1 // pred_check
      _
    $region63: #{tpu_custom_call.1} parent=1 // pred_check_branch
      %197 = sbr.rel (0) target = $region65
    $region64: #{tpu_custom_call.1} parent=1 // pred_region
      _
    $region65: #{tpu_custom_call.1} parent=1 // pred_fallthru
      _
    // Predicated region
    $region66: #{tpu_custom_call.1} parent=1 // pred_check
      _
    $region67: #{tpu_custom_call.1} parent=1 // pred_check_branch
      %199 = sbr.rel (0) target = $region69
    $region68: #{tpu_custom_call.1} parent=1 // pred_region
      _
    $region69: #{tpu_custom_call.1} parent=1 // pred_fallthru
      _
    %200 = vsyncpa [#allocation5], 1
    %201 = vsyncpa [#allocation8], 1
    %202 = vsyncpa [#allocation6], 1
    %203 = vsyncpa [#allocation11], 1

</llo_original>
